<compile_context>
chip_gen: v7x
topology: tpu7x:2x2x1
jax: 0.10.0
libtpu: 0.0.40
codegen_flags: <defaults>
</compile_context>

<pallas_src>
import jax
import jax.numpy as jnp
from jax import lax
from jax.experimental import pallas as pl
from jax.experimental.pallas import tpu as pltpu

_LANE = 128
_MAX_TILE_M = 64 * 1024   # per-step traffic amortizes the ~0.35us step cost well before this
_MIN_GRID_STEPS = 4       # keep both v7x TensorCores busy on small batches


def _cdiv(a, b):
    return -(-a // b)


def _conv_mm_kernel(p_ref, w_ref, b_ref, o_ref):
    # p_ref: (1, K, TM)      compute dtype -- patch tile, lane axis = output pixels
    # w_ref: (C_out, K)      compute dtype -- resident
    # b_ref: (C_out, 1) f32  -- resident
    # o_ref: (1, C_out, TM)  out dtype
    acc = jnp.dot(w_ref[...], p_ref[0], preferred_element_type=jnp.float32)
    acc = acc + b_ref[...]                        # broadcast over lanes
    o_ref[0] = jnp.maximum(acc, 0.0).astype(o_ref.dtype)


def _vmem_budget_bytes():
    """Generation-aware scoped-VMEM budget (v7x: 64 MiB/TC, v5e/v6e: 128 MiB)."""
    cap = None
    try:
        cap = getattr(pltpu.get_tpu_info(), "vmem_capacity_bytes", None)
    except Exception:
        cap = None
    if not cap:
        cap = 64 * 1024 * 1024            # conservative fallback = v7x floor
    return max(16 << 20, min(int(cap) * 3 // 4, 96 << 20))


def _choose_tile_m(hw, n_images, k, c_out, in_bytes, out_bytes, vmem_budget):
    """Pick the output-pixel tile width and patch pipeline depth.

    VMEM/step ~= n_in_buf*K*in_bytes*TM + 2*C_out*out_bytes*TM + 4*C_out*TM (f32 acc)
                 + resident weights/bias.  TM is sized to fill the budget,
    capped so (a) the grid has >= _MIN_GRID_STEPS steps (v7x dual TC) and
    (b) TM <= _MAX_TILE_M.
    """
    def vmem_tile(n_in_buf):
        per_px = n_in_buf * k * in_bytes + 2 * c_out * out_bytes + 4 * c_out
        fixed = c_out * k * in_bytes + 8 * c_out + (2 << 20)   # weights+bias+slack
        return max(0, (vmem_budget - fixed) // per_px)

    if n_images < _MIN_GRID_STEPS:
        tile_steps = _cdiv(hw, _cdiv(_MIN_GRID_STEPS, n_images))
    else:
        tile_steps = hw

    t2 = vmem_tile(2)
    tile = min(hw, t2, tile_steps, _MAX_TILE_M)
    in_buffers = 2
    # VMEM-bound large-K config with a tiny per-step patch DMA: spend the VMEM
    # on a 3rd patch buffer (keeps the DMA queue full) rather than a wider tile.
    if tile == t2 and tile < min(hw, tile_steps, _MAX_TILE_M) \
            and tile * k * in_bytes < (2 << 20):
        t3 = vmem_tile(3)
        if t3 >= _LANE:
            tile, in_buffers = min(tile, t3), 3

    if tile >= hw:
        return hw, in_buffers
    tile = (tile // _LANE) * _LANE   # lane dim must be a 128-multiple or full extent
    if tile == 0:
        tile = hw if hw <= _LANE else _LANE
    return tile, in_buffers


def down_stride_forward(x, weight, bias, *, tile_m=None,
                        compute_dtype=jnp.bfloat16, out_dtype=None):
    """
    DownStride forward: Conv2d(kernel_size=2, stride=2) + ReLU.

    x:      (N, C_in, H, W)  NCHW (PyTorch convention)
    weight: (C_out, C_in, 2, 2)
    bias:   (C_out,)
    returns (N, C_out, H//2, W//2) NCHW in `out_dtype` (default: x.dtype)
    """
    n, c_in, h, w = x.shape
    c_out = weight.shape[0]
    ho, wo = h // 2, w // 2
    hw = ho * wo
    k = c_in * 4
    out_dtype = x.dtype if out_dtype is None else out_dtype

    # PyTorch Conv2d(k=2, s=2) floors odd spatial dims.
    x = x[:, :, : 2 * ho, : 2 * wo]

    # Space-to-depth ("patchify"), transposed so the output-pixel axis is minor:
    #   P[n, ic*4 + kh*2 + kw, i*Wo + j] = x[n, ic, 2i+kh, 2j+kw]
    # Single fused XLA transpose+cast pass; see TODO(synk) above about fusing it.
    xp = x.reshape(n, c_in, ho, 2, wo, 2)
    xp = jnp.transpose(xp, (0, 1, 3, 5, 2, 4))              # (N, C_in, 2, 2, Ho, Wo)
    patches = xp.reshape(n, k, hw).astype(compute_dtype)    # (N, K, Ho*Wo)

    w_mat = weight.reshape(c_out, k).astype(compute_dtype)  # matches (ic, kh, kw)
    b_mat = bias.astype(jnp.float32).reshape(c_out, 1)      # (C_out, 1)

    in_bytes = jnp.dtype(compute_dtype).itemsize
    out_bytes = jnp.dtype(out_dtype).itemsize
    vmem_budget = _vmem_budget_bytes()

    if tile_m is None:
        tile_m, in_buffers = _choose_tile_m(hw, n, k, c_out, in_bytes,
                                            out_bytes, vmem_budget)
    else:
        in_buffers = 2
        tile_m = hw if tile_m >= hw else max(_LANE, (tile_m // _LANE) * _LANE)
        tile_m = min(tile_m, hw)

    grid = (n, pl.cdiv(hw, tile_m))       # no jnp.pad; ragged last tile is masked

    patch_map = lambda ni, mi: (ni, 0, mi)
    const_map = lambda ni, mi: (0, 0)
    out_spec = pl.BlockSpec((1, c_out, tile_m), lambda ni, mi: (ni, 0, mi))

    def _run(use_pipeline_hints):
        if use_pipeline_hints:
            in_specs = [
                pl.BlockSpec((1, k, tile_m), patch_map)
                if in_buffers == 2 else
                pl.BlockSpec((1, k, tile_m), patch_map,
                             pipeline_mode=pl.Buffered(in_buffers)),
                # Constant index_map -> never re-DMA'd; one buffer is enough.
                pl.BlockSpec((c_out, k), const_map, pipeline_mode=pl.Buffered(1)),
                pl.BlockSpec((c_out, 1), const_map, pipeline_mode=pl.Buffered(1)),
            ]
        else:
            in_specs = [
                pl.BlockSpec((1, k, tile_m), patch_map),
                pl.BlockSpec((c_out, k), const_map),
                pl.BlockSpec((c_out, 1), const_map),
            ]
        return pl.pallas_call(
            _conv_mm_kernel,
            out_shape=jax.ShapeDtypeStruct((n, c_out, hw), out_dtype),
            grid_spec=pltpu.PrefetchScalarGridSpec(
                num_scalar_prefetch=0,
                grid=grid,
                in_specs=in_specs,
                out_specs=out_spec,
            ),
            compiler_params=pltpu.CompilerParams(
                dimension_semantics=("parallel", "parallel"),
                vmem_limit_bytes=vmem_budget,
            ),
        )(patches, w_mat, b_mat)

    try:
        out = _run(True)
    except Exception:
        # Fallback for JAX builds without BlockSpec pipeline_mode / pl.Buffered
        # (or that reject buffer_count=1); default double-buffering is correct.
        out = _run(False)

    # (N, C_out, Ho*Wo) -> (N, C_out, Ho, Wo): free minor-dim split, already NCHW.
    return out.reshape(n, c_out, ho, wo)


def _reference(x, weight, bias):
    y = lax.conv_general_dilated(
        x, weight, window_strides=(2, 2), padding="VALID",
        dimension_numbers=("NCHW", "OIHW", "NCHW"))
    return jnp.maximum(y + bias.reshape(1, -1, 1, 1), 0.0)


if __name__ == "__main__":
    key = jax.random.PRNGKey(0)
    kx, kw_, kb = jax.random.split(key, 3)

    N, C_IN, C_OUT, H, W = 2, 4, 8, 16, 16
    x = jax.random.normal(kx, (N, C_IN, H, W), dtype=jnp.float32)
    fan_in = C_IN * 2 * 2
    weight = jax.random.normal(kw_, (C_OUT, C_IN, 2, 2), dtype=jnp.float32) / jnp.sqrt(fan_in)
    bias = jax.random.normal(kb, (C_OUT,), dtype=jnp.float32) * 0.01

    y = down_stride_forward(x, weight, bias)
    jax.block_until_ready(y)
    assert y.shape == (N, C_OUT, H // 2, W // 2)
    assert y.dtype == x.dtype

    # Strict check: same bf16-rounded operands in both paths (f32 accumulation).
    xq = x.astype(jnp.bfloat16).astype(jnp.float32)
    wq = weight.astype(jnp.bfloat16).astype(jnp.float32)
    ref_q = _reference(xq, wq, bias)
    assert jnp.allclose(y, ref_q, atol=1e-3, rtol=1e-3)
    # Loose check against the exact f32 conv (difference = bf16 operand rounding).
    assert jnp.allclose(y, _reference(x, weight, bias), atol=5e-2, rtol=5e-2)

    # Multi-step grid with ragged last tile (hw = 576, not a multiple of 128;
    # auto-derived tile_m = 256 -> grid (2, 3), last tile has 64 live pixels).
    H2, W2 = 48, 48
    x2 = jax.random.normal(kx, (N, C_IN, H2, W2), dtype=jnp.float32)
    y2 = down_stride_forward(x2, weight, bias)
    jax.block_until_ready(y2)
    assert y2.shape == (N, C_OUT, H2 // 2, W2 // 2)
    x2q = x2.astype(jnp.bfloat16).astype(jnp.float32)
    ref2_q = _reference(x2q, wq, bias)
    assert jnp.allclose(y2, ref2_q, atol=1e-3, rtol=1e-3)

    # Explicit small-tile override (exercises the manual tile path + masking).
    y2b = down_stride_forward(x2, weight, bias, tile_m=128)
    jax.block_until_ready(y2b)
    assert jnp.allclose(y2b, ref2_q, atol=1e-3, rtol=1e-3)

    # bf16-output path (halves output HBM bytes / out-block VMEM).
    y3 = down_stride_forward(x, weight, bias, out_dtype=jnp.bfloat16)
    jax.block_until_ready(y3)
    assert y3.dtype == jnp.bfloat16
    assert jnp.allclose(y3.astype(jnp.float32), ref_q, atol=3e-2, rtol=3e-2)

    print("KERNEL_OK")
</pallas_src>

<mosaic_0001>
module attributes {stable_mosaic.version = 11 : i64} {
  func.func @_conv_mm_kernel(%arg0: i32, %arg1: i32, %arg2: memref<1x16x64xbf16, #tpu.memory_space<vmem>>, %arg3: memref<8x16xbf16, #tpu.memory_space<vmem>>, %arg4: memref<8x1xf32, #tpu.memory_space<vmem>>, %arg5: memref<1x8x64xf32, #tpu.memory_space<vmem>>) attributes {dimension_semantics = [#tpu.dimension_semantics<parallel>, #tpu.dimension_semantics<parallel>], iteration_bounds = array<i64: 2, 1>, scalar_prefetch = 0 : i64, scratch_operands = 0 : i64, tpu.core_type = #tpu.core_type<tc>, window_params = [{transform_indices = @transform_0, window_bounds = array<i64: 1, 16, 64>}, {pipeline_mode = #tpu.pipeline_mode<synchronous>, transform_indices = @transform_1, window_bounds = array<i64: 8, 16>}, {pipeline_mode = #tpu.pipeline_mode<synchronous>, transform_indices = @transform_2, window_bounds = array<i64: 8, 1>}, {transform_indices = @transform_3, window_bounds = array<i64: 1, 8, 64>}]} {
    %c0 = arith.constant 0 : index
    %c0_0 = arith.constant 0 : index
    %0 = vector.load %arg3[%c0, %c0_0] : memref<8x16xbf16, #tpu.memory_space<vmem>>, vector<8x16xbf16>
    %c0_1 = arith.constant 0 : index
    %c0_2 = arith.constant 0 : index
    %c0_3 = arith.constant 0 : index
    %1 = vector.load %arg2[%c0_1, %c0_2, %c0_3] : memref<1x16x64xbf16, #tpu.memory_space<vmem>>, vector<1x16x64xbf16>
    %2 = vector.shape_cast %1 : vector<1x16x64xbf16> to vector<16x64xbf16>
    %cst = arith.constant dense<0.000000e+00> : vector<8x64xf32>
    %3 = tpu.matmul %0, %2, %cst {dimension_numbers = #tpu.dot_dimension_numbers<[1], [0], [0], [1], [0, 0, 1, 1], [], []>} : vector<8x16xbf16>, vector<16x64xbf16>, vector<8x64xf32> -> vector<8x64xf32>
    %c0_4 = arith.constant 0 : index
    %c0_5 = arith.constant 0 : index
    %4 = vector.load %arg4[%c0_4, %c0_5] : memref<8x1xf32, #tpu.memory_space<vmem>>, vector<8x1xf32>
    %5 = vector.broadcast %4 : vector<8x1xf32> to vector<8x64xf32>
    %6 = arith.addf %3, %5 : vector<8x64xf32>
    %cst_6 = arith.constant 0.000000e+00 : f32
    %7 = vector.broadcast %cst_6 : f32 to vector<8x64xf32>
    %8 = arith.maximumf %6, %7 : vector<8x64xf32>
    %c0_7 = arith.constant 0 : index
    %c0_8 = arith.constant 0 : index
    %c0_9 = arith.constant 0 : index
    %9 = vector.load %arg5[%c0_7, %c0_8, %c0_9] : memref<1x8x64xf32, #tpu.memory_space<vmem>>, vector<1x8x64xf32>
    %10 = vector.shape_cast %9 : vector<1x8x64xf32> to vector<8x64xf32>
    %11 = vector.shape_cast %8 : vector<8x64xf32> to vector<1x8x64xf32>
    tpu.vector_store %arg5[%c0_7, %c0_8, %c0_9], %11 {strides = array<i32>} : memref<1x8x64xf32, #tpu.memory_space<vmem>>, vector<1x8x64xf32>,
    return
  }
  func.func @transform_0(%arg0: i32, %arg1: i32) -> (i32, i32, i32) {
    %c0_i32 = arith.constant 0 : i32
    %c0_i32_0 = arith.constant 0 : i32
    return %arg0, %c0_i32, %arg1 : i32, i32, i32
  }
  func.func @transform_1(%arg0: i32, %arg1: i32) -> (i32, i32) {
    %c0_i32 = arith.constant 0 : i32
    %c0_i32_0 = arith.constant 0 : i32
    %c0_i32_1 = arith.constant 0 : i32
    return %c0_i32, %c0_i32_0 : i32, i32
  }
  func.func @transform_2(%arg0: i32, %arg1: i32) -> (i32, i32) {
    %c0_i32 = arith.constant 0 : i32
    %c0_i32_0 = arith.constant 0 : i32
    %c0_i32_1 = arith.constant 0 : i32
    return %c0_i32, %c0_i32_0 : i32, i32
  }
  func.func @transform_3(%arg0: i32, %arg1: i32) -> (i32, i32, i32) {
    %c0_i32 = arith.constant 0 : i32
    %c0_i32_0 = arith.constant 0 : i32
    return %arg0, %c0_i32, %arg1 : i32, i32, i32
  }
}

module attributes {stable_mosaic.version = 11 : i64} {
  func.func @_conv_mm_kernel(%arg0: i32, %arg1: i32, %arg2: memref<1x16x64xbf16, #tpu.memory_space<vmem>>, %arg3: memref<8x16xbf16, #tpu.memory_space<vmem>>, %arg4: memref<8x1xf32, #tpu.memory_space<vmem>>, %arg5: memref<1x8x64xf32, #tpu.memory_space<vmem>>) attributes {dimension_semantics = [#tpu.dimension_semantics<parallel>, #tpu.dimension_semantics<parallel>], iteration_bounds = array<i64: 2, 1>, scalar_prefetch = 0 : i64, scratch_operands = 0 : i64, tpu.core_type = #tpu.core_type<tc>, window_params = [{transform_indices = @transform_0, window_bounds = array<i64: 1, 16, 64>}, {pipeline_mode = #tpu.pipeline_mode<synchronous>, transform_indices = @transform_1, window_bounds = array<i64: 8, 16>}, {pipeline_mode = #tpu.pipeline_mode<synchronous>, transform_indices = @transform_2, window_bounds = array<i64: 8, 1>}, {transform_indices = @transform_3, window_bounds = array<i64: 1, 8, 64>}]} {
    %c0 = arith.constant 0 : index
    %c0_0 = arith.constant 0 : index
    %0 = vector.load %arg3[%c0, %c0_0] : memref<8x16xbf16, #tpu.memory_space<vmem>>, vector<8x16xbf16>
    %c0_1 = arith.constant 0 : index
    %c0_2 = arith.constant 0 : index
    %c0_3 = arith.constant 0 : index
    %1 = vector.load %arg2[%c0_1, %c0_2, %c0_3] : memref<1x16x64xbf16, #tpu.memory_space<vmem>>, vector<1x16x64xbf16>
    %2 = vector.shape_cast %1 : vector<1x16x64xbf16> to vector<16x64xbf16>
    %cst = arith.constant dense<0.000000e+00> : vector<8x64xf32>
    %3 = tpu.matmul %0, %2, %cst {dimension_numbers = #tpu.dot_dimension_numbers<[1], [0], [0], [1], [0, 0, 1, 1], [], []>} : vector<8x16xbf16>, vector<16x64xbf16>, vector<8x64xf32> -> vector<8x64xf32>
    %c0_4 = arith.constant 0 : index
    %c0_5 = arith.constant 0 : index
    %4 = vector.load %arg4[%c0_4, %c0_5] : memref<8x1xf32, #tpu.memory_space<vmem>>, vector<8x1xf32>
    %5 = vector.broadcast %4 : vector<8x1xf32> to vector<8x64xf32>
    %6 = arith.addf %3, %5 : vector<8x64xf32>
    %cst_6 = arith.constant 0.000000e+00 : f32
    %7 = vector.broadcast %cst_6 : f32 to vector<8x64xf32>
    %8 = arith.maximumf %6, %7 : vector<8x64xf32>
    %c0_7 = arith.constant 0 : index
    %c0_8 = arith.constant 0 : index
    %c0_9 = arith.constant 0 : index
    %9 = vector.load %arg5[%c0_7, %c0_8, %c0_9] : memref<1x8x64xf32, #tpu.memory_space<vmem>>, vector<1x8x64xf32>
    %10 = vector.shape_cast %9 : vector<1x8x64xf32> to vector<8x64xf32>
    %11 = vector.shape_cast %8 : vector<8x64xf32> to vector<1x8x64xf32>
    tpu.vector_store %arg5[%c0_7, %c0_8, %c0_9], %11 {strides = array<i32>} : memref<1x8x64xf32, #tpu.memory_space<vmem>>, vector<1x8x64xf32>,
    return
  }
  func.func @transform_0(%arg0: i32, %arg1: i32) -> (i32, i32, i32) {
    %c0_i32 = arith.constant 0 : i32
    %c0_i32_0 = arith.constant 0 : i32
    return %arg0, %c0_i32, %arg1 : i32, i32, i32
  }
  func.func @transform_1(%arg0: i32, %arg1: i32) -> (i32, i32) {
    %c0_i32 = arith.constant 0 : i32
    %c0_i32_0 = arith.constant 0 : i32
    %c0_i32_1 = arith.constant 0 : i32
    return %c0_i32, %c0_i32_0 : i32, i32
  }
  func.func @transform_2(%arg0: i32, %arg1: i32) -> (i32, i32) {
    %c0_i32 = arith.constant 0 : i32
    %c0_i32_0 = arith.constant 0 : i32
    %c0_i32_1 = arith.constant 0 : i32
    return %c0_i32, %c0_i32_0 : i32, i32
  }
  func.func @transform_3(%arg0: i32, %arg1: i32) -> (i32, i32, i32) {
    %c0_i32 = arith.constant 0 : i32
    %c0_i32_0 = arith.constant 0 : i32
    return %arg0, %c0_i32, %arg1 : i32, i32, i32
  }
}

</mosaic_0001>

<llo_original>
// kernel: tpu_custom_call.1
$region0: #{tpu_custom_call.1}
  #allocation0 [shape = 'u32[]', space=smem, size = 0x4, offset = 0x4, fixed_abs, tag = 'smem constant byte address 0x4 - core index']
  #allocation1 [shape = 'u32[144,128]{1,0:T(1,128)}', space=vmem, size = 0x12000, scoped, tag = 'internal scratch']
  %s0 = inlined_call_operand.hbm [shape: bf16[2,16,64], index: 0, kind: input, shape index: {}]
  %s1 = inlined_call_operand.vmem [shape: bf16[8,16], index: 1, kind: input, shape index: {}]
  %s2 = inlined_call_operand.vmem [shape: f32[8,1], index: 2, kind: input, shape index: {}]
  %s3 = inlined_call_operand.hbm [shape: f32[2,8,64], index: 3, kind: output, shape index: {}]
  %s4 = sld [smem:[#allocation0]]
  $region49: #{tpu_custom_call.1} parent=0
    _
  %s6 = ssub.s32 1, %s4
  %s7 = scalar_select 0, %s6, %s4
  $region1: #{tpu_custom_call.1} parent=0
    #allocation2 [shape = 'u8[8192]{0}', space=vmem, size = 0x2000, scoped, tag = 'input window, operand 0']
    #allocation3 [shape = 's32[2]{0}', space=sflag, size = 0x8, scoped, tag = 'scoped memory for tpu_custom_call.1']
    #allocation4 [shape = 's32[2]{0}', space=sflag, size = 0x8, scoped, tag = 'scoped memory for tpu_custom_call.1']
    #allocation5 [shape = 'u8[8192]{0}', space=vmem, size = 0x2000, scoped, tag = 'output window, operand 0']
    %8 = vsyncpa [#allocation3], 0
    %s9 = scalar_lea.sflag [#allocation3], 1
    %10 = vsyncpa %s9, 0
    %11 = vsyncpa [#allocation4], 0
    %s12 = scalar_lea.sflag [#allocation4], 1
    %13 = vsyncpa %s12, 0
    loop: start=0, step=1, limit=4
    $region2: #{tpu_custom_call.1} parent=1 // loop_pre_header
      _
    $region3: #{tpu_custom_call.1} parent=1 // loop_header
      %s15 = sphi 0, %s19
      %p16 = scmp.ge.s32.totalorder %s15, 4
      %s22 = sphi 0, %s34
      %s23 = sphi 0, %s30
      %s24 = sphi 0, %s22
      %s25 = sphi 0, %s23
      %s26 = sphi 0, %s24
      %s27 = sphi 0, %s25
      %s39 = sphi 0, %s41
      %s42 = sphi 0, %s39
      %s43 = sphi 0, %s42
      %s59 = sphi 0, %s43
      %s63 = sphi 0, %s63
      %s65 = sphi 0, %s63
      %s66 = sphi 0, %s65
      %s80 = sphi 0, %s66
      %s84 = sphi 0, %s84
      %s86 = sphi 0, %s84
      %s87 = sphi 0, %s86
      %s101 = sphi 0, %s87
      %s109 = sphi 0, %s111
      %s112 = sphi 0, %s109
      %s113 = sphi 0, %s112
      %s129 = sphi 0, %s113
    $region4: #{tpu_custom_call.1} parent=1 // loop_header_branch
      %18 = sbr.rel (%p16) target = $region8
    $region5: #{tpu_custom_call.1} parent=1 // loop_body
      %s20 = ssub.s32 %s15, 1
      %s21 = ssub.s32 %s15, 2
      %s28 = sadd.s32 1, %s23
      %p29 = scmp.ge.s32.totalorder %s28, 1
      %s30 = scalar_select %p29, 0, %s28
      %s31 = sadd.s32 1, %s22
      %s32 = scalar_select %p29, %s31, %s22
      %p33 = scmp.ge.s32.totalorder %s32, 2
      %s34 = scalar_select %p33, 0, %s32
      %s35 = ssub.s32 %s22, %s34
      %s36 = ssub.s32 %s23, %s30
      %s37 = sor.u32 %s35, %s36
      %p38 = scmp.eq.s32.totalorder %s37, 0
      %s40 = sadd.s32 %s39, 1
      %s41 = scalar_select %p38, %s39, %s40
      %p44 = pneg %p38
      %p45 = scmp.eq.s32.totalorder %s15, 1
      %p46 = por %p44, %p45
      %p47 = scmp.ne.s32.totalorder %s39, %s42
      %p48 = scmp.eq.s32.totalorder %s15, 0
      %p49 = por %p47, %p48
      %p50 = scmp.ne.s32.totalorder %s39, %s42
      %p51 = scmp.eq.s32.totalorder %s20, 1
      %p52 = por %p50, %p51
      %p53 = scmp.ne.s32.totalorder %s42, %s43
      %p54 = scmp.eq.s32.totalorder %s20, 0
      %p55 = por %p53, %p54
      %p56 = scmp.ne.s32.totalorder %s42, %s43
      %p57 = scmp.eq.s32.totalorder %s21, 1
      %p58 = por %p56, %p57
      %p60 = scmp.ne.s32.totalorder %s43, %s59
      %p61 = scmp.eq.s32.totalorder %s21, 0
      %p62 = por %p60, %p61
      %s64 = sadd.s32 %s63, 1
      %p67 = scmp.eq.s32.totalorder %s15, 1
      %p68 = scmp.ne.s32.totalorder %s63, %s65
      %p69 = scmp.eq.s32.totalorder %s15, 0
      %p70 = por %p68, %p69
      %p71 = scmp.ne.s32.totalorder %s63, %s65
      %p72 = scmp.eq.s32.totalorder %s20, 1
      %p73 = por %p71, %p72
      %p74 = scmp.ne.s32.totalorder %s65, %s66
      %p75 = scmp.eq.s32.totalorder %s20, 0
      %p76 = por %p74, %p75
      %p77 = scmp.ne.s32.totalorder %s65, %s66
      %p78 = scmp.eq.s32.totalorder %s21, 1
      %p79 = por %p77, %p78
      %p81 = scmp.ne.s32.totalorder %s66, %s80
      %p82 = scmp.eq.s32.totalorder %s21, 0
      %p83 = por %p81, %p82
      %s85 = sadd.s32 %s84, 1
      %p88 = scmp.eq.s32.totalorder %s15, 1
      %p89 = scmp.ne.s32.totalorder %s84, %s86
      %p90 = scmp.eq.s32.totalorder %s15, 0
      %p91 = por %p89, %p90
      %p92 = scmp.ne.s32.totalorder %s84, %s86
      %p93 = scmp.eq.s32.totalorder %s20, 1
      %p94 = por %p92, %p93
      %p95 = scmp.ne.s32.totalorder %s86, %s87
      %p96 = scmp.eq.s32.totalorder %s20, 0
      %p97 = por %p95, %p96
      %p98 = scmp.ne.s32.totalorder %s86, %s87
      %p99 = scmp.eq.s32.totalorder %s21, 1
      %p100 = por %p98, %p99
      %p102 = scmp.ne.s32.totalorder %s87, %s101
      %p103 = scmp.eq.s32.totalorder %s21, 0
      %p104 = por %p102, %p103
      %s105 = ssub.s32 %s22, %s34
      %s106 = ssub.s32 %s23, %s30
      %s107 = sor.u32 %s105, %s106
      %p108 = scmp.eq.s32.totalorder %s107, 0
      %s110 = sadd.s32 %s109, 1
      %s111 = scalar_select %p108, %s109, %s110
      %p114 = pneg %p108
      %p115 = scmp.eq.s32.totalorder %s15, 1
      %p116 = por %p114, %p115
      %p117 = scmp.ne.s32.totalorder %s109, %s112
      %p118 = scmp.eq.s32.totalorder %s15, 0
      %p119 = por %p117, %p118
      %p120 = scmp.ne.s32.totalorder %s109, %s112
      %p121 = scmp.eq.s32.totalorder %s20, 1
      %p122 = por %p120, %p121
      %p123 = scmp.ne.s32.totalorder %s112, %s113
      %p124 = scmp.eq.s32.totalorder %s20, 0
      %p125 = por %p123, %p124
      %p126 = scmp.ne.s32.totalorder %s112, %s113
      %p127 = scmp.eq.s32.totalorder %s21, 1
      %p128 = por %p126, %p127
      %p130 = scmp.ne.s32.totalorder %s113, %s129
      %p131 = scmp.eq.s32.totalorder %s21, 0
      %p132 = por %p130, %p131
      %p133 = scmp.le.s32.totalorder 1, %s15
      %p134 = scmp.lt.s32.totalorder %s15, 3
      %p135 = pnand %p133, %p134
      %p136 = pneg %p135
      // Predicated region
      $region9: #{tpu_custom_call.1} parent=5 // pred_check
        _
      $region10: #{tpu_custom_call.1} parent=5 // pred_check_branch
        %138 = sbr.rel (%p135) target = $region12
      $region11: #{tpu_custom_call.1} parent=5 // pred_region
        %s139 = ssub.s32 %s15, 1
        // Predicated region
        $region13: #{tpu_custom_call.1} parent=11 // pred_check
          %p140 = pneg %p76
        $region14: #{tpu_custom_call.1} parent=11 // pred_check_branch
          %142 = sbr.rel (%p140) target = $region16
        $region15: #{tpu_custom_call.1} parent=11 // pred_region
          _
        $region16: #{tpu_custom_call.1} parent=11 // pred_fallthru
          _
        // Predicated region
        $region17: #{tpu_custom_call.1} parent=11 // pred_check
          %p143 = pneg %p97
        $region18: #{tpu_custom_call.1} parent=11 // pred_check_branch
          %145 = sbr.rel (%p143) target = $region20
        $region19: #{tpu_custom_call.1} parent=11 // pred_region
          _
        $region20: #{tpu_custom_call.1} parent=11 // pred_fallthru
          _
      $region12: #{tpu_custom_call.1} parent=5 // pred_fallthru
        _
      %p146 = scmp.lt.s32.totalorder %s15, 2
      // Predicated region
      $region21: #{tpu_custom_call.1} parent=5 // pred_check
        %p147 = pneg %p146
      $region22: #{tpu_custom_call.1} parent=5 // pred_check_branch
        %149 = sbr.rel (%p147) target = $region24
      $region23: #{tpu_custom_call.1} parent=5 // pred_region
        // Predicated region
        $region25: #{tpu_custom_call.1} parent=23 // pred_check
          %p150 = pneg %p49
        $region26: #{tpu_custom_call.1} parent=23 // pred_check_branch
          %152 = sbr.rel (%p150) target = $region28
        $region27: #{tpu_custom_call.1} parent=23 // pred_region
          %s153 = sand.u32 %s39, 1
          %s154 = scalar_lea.sflag [#allocation3], %s153
          %s155 = sand.u32 %s39, 1
          %s156 = smul.addr %s155, 8
          %s157 = scalar_lea.vmem [#allocation2], %s156
          %s159 = ssub.s32 128, 128
          %160 = vsyncadd %s154, %s159
          %s161 = smul.addr %s22, 2
          %s162 = sadd.s32 %s23, %s161
          %s163 = smul.addr %s162, 64
          %s164 = scalar_lea.hbm %s0, %s163
          %s165 = sshll.u32 %s157, 4
          %s166 = int_to_ptr.vmem [resolvable:$true] %s165
          %171 = dma.hbm_to_vmem [thread:$0]  %s164, 128, %s166, %s154, 64, 64, 4
        $region28: #{tpu_custom_call.1} parent=23 // pred_fallthru
          _
      $region24: #{tpu_custom_call.1} parent=5 // pred_fallthru
        _
      %p172 = scmp.le.s32.totalorder 1, %s15
      %p173 = scmp.lt.s32.totalorder %s15, 3
      %p174 = pnand %p172, %p173
      %p175 = pneg %p174
      // Predicated region
      $region29: #{tpu_custom_call.1} parent=5 // pred_check
        _
      $region30: #{tpu_custom_call.1} parent=5 // pred_check_branch
        %177 = sbr.rel (%p174) target = $region32
      $region31: #{tpu_custom_call.1} parent=5 // pred_region
        %s178 = ssub.s32 %s15, 1
        %s179 = sand.u32 %s42, 1
        %s180 = scalar_lea.sflag [#allocation3], %s179
        %s181 = sand.u32 %s42, 1
        %s182 = smul.addr %s181, 8
        %s183 = scalar_lea.vmem [#allocation2], %s182
        // Predicated region
        $region33: #{tpu_custom_call.1} parent=31 // pred_check
          %p184 = pneg %p55
        $region34: #{tpu_custom_call.1} parent=31 // pred_check_branch
          %186 = sbr.rel (%p184) target = $region36
        $region35: #{tpu_custom_call.1} parent=31 // pred_region
          %187 = dma.done %s180, 128
        $region36: #{tpu_custom_call.1} parent=31 // pred_fallthru
          _
        %s188 = sand.u32 %s42, 1
        %s189 = scalar_lea.sflag [#allocation3], %s188
        %s190 = sand.u32 %s42, 1
        %s191 = smul.addr %s190, 8
        %s192 = scalar_lea.vmem [#allocation2], %s191
        %p193 = pneg %p55
        %p194 = pneg %p52
        %p195 = pneg %p76
        %p196 = pneg %p73
        %p197 = pneg %p97
        %p198 = pneg %p94
        %p199 = pneg %p125
        %p200 = pneg %p122
        %s201 = sand.u32 %s112, 1
        %s202 = scalar_lea.sflag [#allocation4], %s201
        %s203 = sand.u32 %s112, 1
        %s204 = smul.addr %s203, 8
        %s205 = scalar_lea.vmem [#allocation5], %s204
        %v207 = vld [vmem:[%s1] sm:$0xf]
        %v208 = vld [vmem:[%s183] sm:$0xf]
        %v209 = vld [vmem:[%s183 + $0x4] sm:$0xf]
        %v210 = vld [vmem:[%s2] sm:$0xff]
        %212 = vset.pattern.permute.xlu0 0
        %213 = vperm.xlu0 %212, %v210
        %v214 = vpop.permute.xlu0 %213
        %v218 = vunpack.c.l.b16 %v208
        %v219 = vunpack.c.l.b16 %v209
        %v220 = vpack.c.b16 %v219, %v218
        %vm222 = vcmask 130048
        %v224 = vsel %vm222, %v207, 0
        %226 = vmatprep.subr.bf16.mxu0 0
        %227 = vmatpush1.bf16.msra.mxu0 %v220
        %228 = vmatprep.subr.bf16.mxu0 0
        %229 = vmatpush1.bf16.msra.mxu0 0
        %230 = vmatprep.subr.bf16.mxu0 0
        %231 = vmatpush1.bf16.msra.mxu0 0
        %232 = vmatprep.subr.bf16.mxu0 0
        %233 = vmatpush1.bf16.msra.mxu0 0
        %234 = vmatprep.subr.bf16.mxu0 0
        %235 = vmatpush1.bf16.msra.mxu0 0
        %236 = vmatprep.subr.bf16.mxu0 0
        %237 = vmatpush1.bf16.msra.mxu0 0
        %238 = vmatprep.subr.bf16.mxu0 0
        %239 = vmatpush1.bf16.msra.mxu0 0
        %240 = vmatprep.subr.bf16.mxu0 0
        %241 = vmatpush1.bf16.msra.mxu0 0
        %242 = vmatprep.subr.bf16.mxu0 0
        %243 = vmatpush1.bf16.msra.mxu0 0
        %244 = vmatprep.subr.bf16.mxu0 0
        %245 = vmatpush1.bf16.msra.mxu0 0
        %246 = vmatprep.subr.bf16.mxu0 0
        %247 = vmatpush1.bf16.msra.mxu0 0
        %248 = vmatprep.subr.bf16.mxu0 0
        %249 = vmatpush1.bf16.msra.mxu0 0
        %250 = vmatprep.subr.bf16.mxu0 0
        %251 = vmatpush1.bf16.msra.mxu0 0
        %252 = vmatprep.subr.bf16.mxu0 0
        %253 = vmatpush1.bf16.msra.mxu0 0
        %254 = vmatprep.subr.bf16.mxu0 0
        %255 = vmatpush1.bf16.msra.mxu0 0
        %256 = vmatprep.subr.bf16.mxu0 0
        %257 = vmatpush1.bf16.msra.mxu0 0
        %258 = vmatprep.mubr.bf16.mxu0 0
        %259 = vmatmul.mubr.bf16.gmra.mrb[0].mxu0 %v224
        %v260 = vpop.f32.mrb[0].mxu0
        %v261 = vadd.f32 %v214, %v260
        %v262 = vpop.f32.mrb[0].mxu0
        %v263 = vpop.f32.mrb[0].mxu0
        %v264 = vpop.f32.mrb[0].mxu0
        %265 = vdwg.mxu0
        %v266 = vmax.f32 %v261, 0.0
        %vm267 = vcmask 523264
        %268 = vst.msk [vmem:[%s205] sm:$0xff] %vm267, %v266
        %s269 = sand.u32 %s112, 1
        %s270 = scalar_lea.sflag [#allocation4], %s269
        %s271 = sand.u32 %s112, 1
        %s272 = smul.addr %s271, 8
        %s273 = scalar_lea.vmem [#allocation5], %s272
        // Predicated region
        $region37: #{tpu_custom_call.1} parent=31 // pred_check
          %p274 = pneg %p122
        $region38: #{tpu_custom_call.1} parent=31 // pred_check_branch
          %276 = sbr.rel (%p274) target = $region40
        $region39: #{tpu_custom_call.1} parent=31 // pred_region
          %s278 = ssub.s32 128, 128
          %279 = vsyncadd %s270, %s278
          %s280 = sadd.s32 %s25, %s24
          %s281 = smul.addr %s280, 128
          %s282 = scalar_lea.hbm %s3, %s281
          %s284 = sshll.u32 %s273, 4
          %s285 = int_to_ptr.vmem [resolvable:$true] %s284
          %287 = dma.vmem_to_hbm [thread:$0]  %s285, 128, %s282, %s270
        $region40: #{tpu_custom_call.1} parent=31 // pred_fallthru
          _
      $region32: #{tpu_custom_call.1} parent=5 // pred_fallthru
        _
      %p288 = scmp.le.s32.totalorder 2, %s15
      // Predicated region
      $region41: #{tpu_custom_call.1} parent=5 // pred_check
        %p289 = pneg %p288
      $region42: #{tpu_custom_call.1} parent=5 // pred_check_branch
        %291 = sbr.rel (%p289) target = $region44
      $region43: #{tpu_custom_call.1} parent=5 // pred_region
        %s292 = ssub.s32 %s15, 2
        // Predicated region
        $region45: #{tpu_custom_call.1} parent=43 // pred_check
          %p293 = pneg %p128
        $region46: #{tpu_custom_call.1} parent=43 // pred_check_branch
          %295 = sbr.rel (%p293) target = $region48
        $region47: #{tpu_custom_call.1} parent=43 // pred_region
          %s296 = sand.u32 %s113, 1
          %s297 = scalar_lea.sflag [#allocation4], %s296
          %s298 = sand.u32 %s113, 1
          %s299 = smul.addr %s298, 8
          %s300 = scalar_lea.vmem [#allocation5], %s299
          %301 = dma.done %s297, 128
        $region48: #{tpu_custom_call.1} parent=43 // pred_fallthru
          _
      $region44: #{tpu_custom_call.1} parent=5 // pred_fallthru
        _
    $region6: #{tpu_custom_call.1} parent=1 // loop_footer
      %s19 = sadd.s32 1, %s15
    $region7: #{tpu_custom_call.1} parent=1 // loop_footer_branch
      %14 = sbr.rel target = $region3
    $region8: #{tpu_custom_call.1} parent=1 // loop_exit
      _
    %302 = vsyncpa [#allocation3], 1
    %s303 = scalar_lea.sflag [#allocation3], 1
    %304 = vsyncpa %s303, 1
    %305 = vsyncpa [#allocation4], 1
    %s306 = scalar_lea.sflag [#allocation4], 1
    %307 = vsyncpa %s306, 1

// kernel: tpu_custom_call.1
$region0: #{tpu_custom_call.1}
  #allocation0 [shape = 'u32[]', space=smem, size = 0x4, offset = 0x4, fixed_abs, tag = 'smem constant byte address 0x4 - core index']
  #allocation1 [shape = 'u32[144,128]{1,0:T(1,128)}', space=vmem, size = 0x12000, scoped, tag = 'internal scratch']
  %s0 = inlined_call_operand.hbm [shape: bf16[2,16,64], index: 0, kind: input, shape index: {}]
  %s1 = inlined_call_operand.vmem [shape: bf16[8,16], index: 1, kind: input, shape index: {}]
  %s2 = inlined_call_operand.vmem [shape: f32[8,1], index: 2, kind: input, shape index: {}]
  %s3 = inlined_call_operand.hbm [shape: f32[2,8,64], index: 3, kind: output, shape index: {}]
  %s4 = sld [smem:[#allocation0]]
  $region49: #{tpu_custom_call.1} parent=0
    _
  %s6 = ssub.s32 1, %s4
  %s7 = scalar_select 0, %s6, %s4
  $region1: #{tpu_custom_call.1} parent=0
    #allocation2 [shape = 'u8[8192]{0}', space=vmem, size = 0x2000, scoped, tag = 'input window, operand 0']
    #allocation3 [shape = 's32[2]{0}', space=sflag, size = 0x8, scoped, tag = 'scoped memory for tpu_custom_call.1']
    #allocation4 [shape = 's32[2]{0}', space=sflag, size = 0x8, scoped, tag = 'scoped memory for tpu_custom_call.1']
    #allocation5 [shape = 'u8[8192]{0}', space=vmem, size = 0x2000, scoped, tag = 'output window, operand 0']
    %8 = vsyncpa [#allocation3], 0
    %s9 = scalar_lea.sflag [#allocation3], 1
    %10 = vsyncpa %s9, 0
    %11 = vsyncpa [#allocation4], 0
    %s12 = scalar_lea.sflag [#allocation4], 1
    %13 = vsyncpa %s12, 0
    loop: start=0, step=1, limit=4
    $region2: #{tpu_custom_call.1} parent=1 // loop_pre_header
      _
    $region3: #{tpu_custom_call.1} parent=1 // loop_header
      %s15 = sphi 0, %s19
      %p16 = scmp.ge.s32.totalorder %s15, 4
      %s22 = sphi 0, %s34
      %s23 = sphi 0, %s30
      %s24 = sphi 0, %s22
      %s25 = sphi 0, %s23
      %s26 = sphi 0, %s24
      %s27 = sphi 0, %s25
      %s39 = sphi 0, %s41
      %s42 = sphi 0, %s39
      %s43 = sphi 0, %s42
      %s59 = sphi 0, %s43
      %s63 = sphi 0, %s63
      %s65 = sphi 0, %s63
      %s66 = sphi 0, %s65
      %s80 = sphi 0, %s66
      %s84 = sphi 0, %s84
      %s86 = sphi 0, %s84
      %s87 = sphi 0, %s86
      %s101 = sphi 0, %s87
      %s109 = sphi 0, %s111
      %s112 = sphi 0, %s109
      %s113 = sphi 0, %s112
      %s129 = sphi 0, %s113
    $region4: #{tpu_custom_call.1} parent=1 // loop_header_branch
      %18 = sbr.rel (%p16) target = $region8
    $region5: #{tpu_custom_call.1} parent=1 // loop_body
      %s20 = ssub.s32 %s15, 1
      %s21 = ssub.s32 %s15, 2
      %s28 = sadd.s32 1, %s23
      %p29 = scmp.ge.s32.totalorder %s28, 1
      %s30 = scalar_select %p29, 0, %s28
      %s31 = sadd.s32 1, %s22
      %s32 = scalar_select %p29, %s31, %s22
      %p33 = scmp.ge.s32.totalorder %s32, 2
      %s34 = scalar_select %p33, 0, %s32
      %s35 = ssub.s32 %s22, %s34
      %s36 = ssub.s32 %s23, %s30
      %s37 = sor.u32 %s35, %s36
      %p38 = scmp.eq.s32.totalorder %s37, 0
      %s40 = sadd.s32 %s39, 1
      %s41 = scalar_select %p38, %s39, %s40
      %p44 = pneg %p38
      %p45 = scmp.eq.s32.totalorder %s15, 1
      %p46 = por %p44, %p45
      %p47 = scmp.ne.s32.totalorder %s39, %s42
      %p48 = scmp.eq.s32.totalorder %s15, 0
      %p49 = por %p47, %p48
      %p50 = scmp.ne.s32.totalorder %s39, %s42
      %p51 = scmp.eq.s32.totalorder %s20, 1
      %p52 = por %p50, %p51
      %p53 = scmp.ne.s32.totalorder %s42, %s43
      %p54 = scmp.eq.s32.totalorder %s20, 0
      %p55 = por %p53, %p54
      %p56 = scmp.ne.s32.totalorder %s42, %s43
      %p57 = scmp.eq.s32.totalorder %s21, 1
      %p58 = por %p56, %p57
      %p60 = scmp.ne.s32.totalorder %s43, %s59
      %p61 = scmp.eq.s32.totalorder %s21, 0
      %p62 = por %p60, %p61
      %s64 = sadd.s32 %s63, 1
      %p67 = scmp.eq.s32.totalorder %s15, 1
      %p68 = scmp.ne.s32.totalorder %s63, %s65
      %p69 = scmp.eq.s32.totalorder %s15, 0
      %p70 = por %p68, %p69
      %p71 = scmp.ne.s32.totalorder %s63, %s65
      %p72 = scmp.eq.s32.totalorder %s20, 1
      %p73 = por %p71, %p72
      %p74 = scmp.ne.s32.totalorder %s65, %s66
      %p75 = scmp.eq.s32.totalorder %s20, 0
      %p76 = por %p74, %p75
      %p77 = scmp.ne.s32.totalorder %s65, %s66
      %p78 = scmp.eq.s32.totalorder %s21, 1
      %p79 = por %p77, %p78
      %p81 = scmp.ne.s32.totalorder %s66, %s80
      %p82 = scmp.eq.s32.totalorder %s21, 0
      %p83 = por %p81, %p82
      %s85 = sadd.s32 %s84, 1
      %p88 = scmp.eq.s32.totalorder %s15, 1
      %p89 = scmp.ne.s32.totalorder %s84, %s86
      %p90 = scmp.eq.s32.totalorder %s15, 0
      %p91 = por %p89, %p90
      %p92 = scmp.ne.s32.totalorder %s84, %s86
      %p93 = scmp.eq.s32.totalorder %s20, 1
      %p94 = por %p92, %p93
      %p95 = scmp.ne.s32.totalorder %s86, %s87
      %p96 = scmp.eq.s32.totalorder %s20, 0
      %p97 = por %p95, %p96
      %p98 = scmp.ne.s32.totalorder %s86, %s87
      %p99 = scmp.eq.s32.totalorder %s21, 1
      %p100 = por %p98, %p99
      %p102 = scmp.ne.s32.totalorder %s87, %s101
      %p103 = scmp.eq.s32.totalorder %s21, 0
      %p104 = por %p102, %p103
      %s105 = ssub.s32 %s22, %s34
      %s106 = ssub.s32 %s23, %s30
      %s107 = sor.u32 %s105, %s106
      %p108 = scmp.eq.s32.totalorder %s107, 0
      %s110 = sadd.s32 %s109, 1
      %s111 = scalar_select %p108, %s109, %s110
      %p114 = pneg %p108
      %p115 = scmp.eq.s32.totalorder %s15, 1
      %p116 = por %p114, %p115
      %p117 = scmp.ne.s32.totalorder %s109, %s112
      %p118 = scmp.eq.s32.totalorder %s15, 0
      %p119 = por %p117, %p118
      %p120 = scmp.ne.s32.totalorder %s109, %s112
      %p121 = scmp.eq.s32.totalorder %s20, 1
      %p122 = por %p120, %p121
      %p123 = scmp.ne.s32.totalorder %s112, %s113
      %p124 = scmp.eq.s32.totalorder %s20, 0
      %p125 = por %p123, %p124
      %p126 = scmp.ne.s32.totalorder %s112, %s113
      %p127 = scmp.eq.s32.totalorder %s21, 1
      %p128 = por %p126, %p127
      %p130 = scmp.ne.s32.totalorder %s113, %s129
      %p131 = scmp.eq.s32.totalorder %s21, 0
      %p132 = por %p130, %p131
      %p133 = scmp.le.s32.totalorder 1, %s15
      %p134 = scmp.lt.s32.totalorder %s15, 3
      %p135 = pnand %p133, %p134
      %p136 = pneg %p135
      // Predicated region
      $region9: #{tpu_custom_call.1} parent=5 // pred_check
        _
      $region10: #{tpu_custom_call.1} parent=5 // pred_check_branch
        %138 = sbr.rel (%p135) target = $region12
      $region11: #{tpu_custom_call.1} parent=5 // pred_region
        %s139 = ssub.s32 %s15, 1
        // Predicated region
        $region13: #{tpu_custom_call.1} parent=11 // pred_check
          %p140 = pneg %p76
        $region14: #{tpu_custom_call.1} parent=11 // pred_check_branch
          %142 = sbr.rel (%p140) target = $region16
        $region15: #{tpu_custom_call.1} parent=11 // pred_region
          _
        $region16: #{tpu_custom_call.1} parent=11 // pred_fallthru
          _
        // Predicated region
        $region17: #{tpu_custom_call.1} parent=11 // pred_check
          %p143 = pneg %p97
        $region18: #{tpu_custom_call.1} parent=11 // pred_check_branch
          %145 = sbr.rel (%p143) target = $region20
        $region19: #{tpu_custom_call.1} parent=11 // pred_region
          _
        $region20: #{tpu_custom_call.1} parent=11 // pred_fallthru
          _
      $region12: #{tpu_custom_call.1} parent=5 // pred_fallthru
        _
      %p146 = scmp.lt.s32.totalorder %s15, 2
      // Predicated region
      $region21: #{tpu_custom_call.1} parent=5 // pred_check
        %p147 = pneg %p146
      $region22: #{tpu_custom_call.1} parent=5 // pred_check_branch
        %149 = sbr.rel (%p147) target = $region24
      $region23: #{tpu_custom_call.1} parent=5 // pred_region
        // Predicated region
        $region25: #{tpu_custom_call.1} parent=23 // pred_check
          %p150 = pneg %p49
        $region26: #{tpu_custom_call.1} parent=23 // pred_check_branch
          %152 = sbr.rel (%p150) target = $region28
        $region27: #{tpu_custom_call.1} parent=23 // pred_region
          %s153 = sand.u32 %s39, 1
          %s154 = scalar_lea.sflag [#allocation3], %s153
          %s155 = sand.u32 %s39, 1
          %s156 = smul.addr %s155, 8
          %s157 = scalar_lea.vmem [#allocation2], %s156
          %s159 = ssub.s32 128, 128
          %160 = vsyncadd %s154, %s159
          %s161 = smul.addr %s22, 2
          %s162 = sadd.s32 %s23, %s161
          %s163 = smul.addr %s162, 64
          %s164 = scalar_lea.hbm %s0, %s163
          %s165 = sshll.u32 %s157, 4
          %s166 = int_to_ptr.vmem [resolvable:$true] %s165
          %171 = dma.hbm_to_vmem [thread:$0]  %s164, 128, %s166, %s154, 64, 64, 4
        $region28: #{tpu_custom_call.1} parent=23 // pred_fallthru
          _
      $region24: #{tpu_custom_call.1} parent=5 // pred_fallthru
        _
      %p172 = scmp.le.s32.totalorder 1, %s15
      %p173 = scmp.lt.s32.totalorder %s15, 3
      %p174 = pnand %p172, %p173
      %p175 = pneg %p174
      // Predicated region
      $region29: #{tpu_custom_call.1} parent=5 // pred_check
        _
      $region30: #{tpu_custom_call.1} parent=5 // pred_check_branch
        %177 = sbr.rel (%p174) target = $region32
      $region31: #{tpu_custom_call.1} parent=5 // pred_region
        %s178 = ssub.s32 %s15, 1
        %s179 = sand.u32 %s42, 1
        %s180 = scalar_lea.sflag [#allocation3], %s179
        %s181 = sand.u32 %s42, 1
        %s182 = smul.addr %s181, 8
        %s183 = scalar_lea.vmem [#allocation2], %s182
        // Predicated region
        $region33: #{tpu_custom_call.1} parent=31 // pred_check
          %p184 = pneg %p55
        $region34: #{tpu_custom_call.1} parent=31 // pred_check_branch
          %186 = sbr.rel (%p184) target = $region36
        $region35: #{tpu_custom_call.1} parent=31 // pred_region
          %187 = dma.done %s180, 128
        $region36: #{tpu_custom_call.1} parent=31 // pred_fallthru
          _
        %s188 = sand.u32 %s42, 1
        %s189 = scalar_lea.sflag [#allocation3], %s188
        %s190 = sand.u32 %s42, 1
        %s191 = smul.addr %s190, 8
        %s192 = scalar_lea.vmem [#allocation2], %s191
        %p193 = pneg %p55
        %p194 = pneg %p52
        %p195 = pneg %p76
        %p196 = pneg %p73
        %p197 = pneg %p97
        %p198 = pneg %p94
        %p199 = pneg %p125
        %p200 = pneg %p122
        %s201 = sand.u32 %s112, 1
        %s202 = scalar_lea.sflag [#allocation4], %s201
        %s203 = sand.u32 %s112, 1
        %s204 = smul.addr %s203, 8
        %s205 = scalar_lea.vmem [#allocation5], %s204
        %v207 = vld [vmem:[%s1] sm:$0xf]
        %v208 = vld [vmem:[%s183] sm:$0xf]
        %v209 = vld [vmem:[%s183 + $0x4] sm:$0xf]
        %v210 = vld [vmem:[%s2] sm:$0xff]
        %212 = vset.pattern.permute.xlu0 0
        %213 = vperm.xlu0 %212, %v210
        %v214 = vpop.permute.xlu0 %213
        %v218 = vunpack.c.l.b16 %v208
        %v219 = vunpack.c.l.b16 %v209
        %v220 = vpack.c.b16 %v219, %v218
        %vm222 = vcmask 130048
        %v224 = vsel %vm222, %v207, 0
        %226 = vmatprep.subr.bf16.mxu0 0
        %227 = vmatpush1.bf16.msra.mxu0 %v220
        %228 = vmatprep.subr.bf16.mxu0 0
        %229 = vmatpush1.bf16.msra.mxu0 0
        %230 = vmatprep.subr.bf16.mxu0 0
        %231 = vmatpush1.bf16.msra.mxu0 0
        %232 = vmatprep.subr.bf16.mxu0 0
        %233 = vmatpush1.bf16.msra.mxu0 0
        %234 = vmatprep.subr.bf16.mxu0 0
        %235 = vmatpush1.bf16.msra.mxu0 0
        %236 = vmatprep.subr.bf16.mxu0 0
        %237 = vmatpush1.bf16.msra.mxu0 0
        %238 = vmatprep.subr.bf16.mxu0 0
        %239 = vmatpush1.bf16.msra.mxu0 0
        %240 = vmatprep.subr.bf16.mxu0 0
        %241 = vmatpush1.bf16.msra.mxu0 0
        %242 = vmatprep.subr.bf16.mxu0 0
        %243 = vmatpush1.bf16.msra.mxu0 0
        %244 = vmatprep.subr.bf16.mxu0 0
        %245 = vmatpush1.bf16.msra.mxu0 0
        %246 = vmatprep.subr.bf16.mxu0 0
        %247 = vmatpush1.bf16.msra.mxu0 0
        %248 = vmatprep.subr.bf16.mxu0 0
        %249 = vmatpush1.bf16.msra.mxu0 0
        %250 = vmatprep.subr.bf16.mxu0 0
        %251 = vmatpush1.bf16.msra.mxu0 0
        %252 = vmatprep.subr.bf16.mxu0 0
        %253 = vmatpush1.bf16.msra.mxu0 0
        %254 = vmatprep.subr.bf16.mxu0 0
        %255 = vmatpush1.bf16.msra.mxu0 0
        %256 = vmatprep.subr.bf16.mxu0 0
        %257 = vmatpush1.bf16.msra.mxu0 0
        %258 = vmatprep.mubr.bf16.mxu0 0
        %259 = vmatmul.mubr.bf16.gmra.mrb[0].mxu0 %v224
        %v260 = vpop.f32.mrb[0].mxu0
        %v261 = vadd.f32 %v214, %v260
        %v262 = vpop.f32.mrb[0].mxu0
        %v263 = vpop.f32.mrb[0].mxu0
        %v264 = vpop.f32.mrb[0].mxu0
        %265 = vdwg.mxu0
        %v266 = vmax.f32 %v261, 0.0
        %vm267 = vcmask 523264
        %268 = vst.msk [vmem:[%s205] sm:$0xff] %vm267, %v266
        %s269 = sand.u32 %s112, 1
        %s270 = scalar_lea.sflag [#allocation4], %s269
        %s271 = sand.u32 %s112, 1
        %s272 = smul.addr %s271, 8
        %s273 = scalar_lea.vmem [#allocation5], %s272
        // Predicated region
        $region37: #{tpu_custom_call.1} parent=31 // pred_check
          %p274 = pneg %p122
        $region38: #{tpu_custom_call.1} parent=31 // pred_check_branch
          %276 = sbr.rel (%p274) target = $region40
        $region39: #{tpu_custom_call.1} parent=31 // pred_region
          %s278 = ssub.s32 128, 128
          %279 = vsyncadd %s270, %s278
          %s280 = sadd.s32 %s25, %s24
          %s281 = smul.addr %s280, 128
          %s282 = scalar_lea.hbm %s3, %s281
          %s284 = sshll.u32 %s273, 4
          %s285 = int_to_ptr.vmem [resolvable:$true] %s284
          %287 = dma.vmem_to_hbm [thread:$0]  %s285, 128, %s282, %s270
        $region40: #{tpu_custom_call.1} parent=31 // pred_fallthru
          _
      $region32: #{tpu_custom_call.1} parent=5 // pred_fallthru
        _
      %p288 = scmp.le.s32.totalorder 2, %s15
      // Predicated region
      $region41: #{tpu_custom_call.1} parent=5 // pred_check
        %p289 = pneg %p288
      $region42: #{tpu_custom_call.1} parent=5 // pred_check_branch
        %291 = sbr.rel (%p289) target = $region44
      $region43: #{tpu_custom_call.1} parent=5 // pred_region
        %s292 = ssub.s32 %s15, 2
        // Predicated region
        $region45: #{tpu_custom_call.1} parent=43 // pred_check
          %p293 = pneg %p128
        $region46: #{tpu_custom_call.1} parent=43 // pred_check_branch
          %295 = sbr.rel (%p293) target = $region48
        $region47: #{tpu_custom_call.1} parent=43 // pred_region
          %s296 = sand.u32 %s113, 1
          %s297 = scalar_lea.sflag [#allocation4], %s296
          %s298 = sand.u32 %s113, 1
          %s299 = smul.addr %s298, 8
          %s300 = scalar_lea.vmem [#allocation5], %s299
          %301 = dma.done %s297, 128
        $region48: #{tpu_custom_call.1} parent=43 // pred_fallthru
          _
      $region44: #{tpu_custom_call.1} parent=5 // pred_fallthru
        _
    $region6: #{tpu_custom_call.1} parent=1 // loop_footer
      %s19 = sadd.s32 1, %s15
    $region7: #{tpu_custom_call.1} parent=1 // loop_footer_branch
      %14 = sbr.rel target = $region3
    $region8: #{tpu_custom_call.1} parent=1 // loop_exit
      _
    %302 = vsyncpa [#allocation3], 1
    %s303 = scalar_lea.sflag [#allocation3], 1
    %304 = vsyncpa %s303, 1
    %305 = vsyncpa [#allocation4], 1
    %s306 = scalar_lea.sflag [#allocation4], 1
    %307 = vsyncpa %s306, 1

</llo_original>
